<compile_context>
chip_gen: v6e
topology: v6e:2x2x1
jax: 0.10.0
libtpu: 0.0.40
codegen_flags: <defaults>
</compile_context>

<pallas_src>
import math

import jax
import jax.numpy as jnp
from jax.experimental import pallas as pl
from jax.experimental.pallas import tpu as pltpu

BETA = 0.8  # module hyper-parameter (no learnable weights in BootHardLoss)


def _round_up(x, m):
    return (x + m - 1) // m * m


def boot_hard_loss(logits, targets, beta=BETA, max_tile_rows=1024):
    """BootHardLoss forward. logits: (N, C), targets: (N,) int."""
    n, c = logits.shape
    in_dtype = logits.dtype
    eps = float(jnp.finfo(in_dtype).eps)       # matches torch.finfo(logits.dtype).eps
    log_lo = math.log(eps)                     # log-domain clamp bounds
    log_hi = math.log(1.0 - eps)

    # --- pick a batch tile: multiple of 8, block <= ~4 MiB so double-buffering stays
    #     well inside v7x's 64 MiB physical / 32 MiB scoped VMEM.
    bytes_per_row = c * jnp.dtype(in_dtype).itemsize
    tile = max(8, min(max_tile_rows, (4 * 1024 * 1024) // max(bytes_per_row, 1)))
    tile = max(8, (tile // 8) * 8)
    tile = min(tile, _round_up(n, 8))
    n_pad = _round_up(n, tile)
    nb = n_pad // tile

    # --- pad the batch; padded rows are masked out inside the kernel.
    x = logits
    t = targets.astype(jnp.int32).reshape(n, 1)
    if n_pad != n:
        x = jnp.pad(x, ((0, n_pad - n), (0, 0)))
        t = jnp.pad(t, ((0, n_pad - n), (0, 0)))

    def kernel(x_ref, t_ref, out_ref):
        i = pl.program_id(0)
        xb = x_ref[...].astype(jnp.float32)        # (tile, C); bf16 input upcast here, not in HBM
        tb = t_ref[...]                            # (tile, 1) int32

        # numerically stable log-softmax over the class (lane) axis, clamp in log domain
        m = jnp.max(xb, axis=1, keepdims=True)     # (tile, 1)
        xm = xb - m
        s = jnp.sum(jnp.exp(xm), axis=1, keepdims=True)
        logp = xm - jnp.log(s)                     # == log(softmax(x))
        logp = jnp.clip(logp, jnp.float32(log_lo), jnp.float32(log_hi))

        # argmax(softmax(x)) == argmax(x); reuse the row max, first-index tie-break (as torch.argmax)
        classes = jax.lax.broadcasted_iota(jnp.int32, (tile, c), 1)
        idx = jnp.min(jnp.where(xb == m, classes, c), axis=1, keepdims=True)   # (tile, 1)

        # fused per-class weights (beta at target class, 1-beta at predicted class; they add if equal)
        w = (jnp.where(classes == tb, jnp.float32(beta), jnp.float32(0.0))
             + jnp.where(classes == idx, jnp.float32(1.0 - beta), jnp.float32(0.0)))

        # mask rows that are batch padding; single fused reduce over the whole tile
        row = jax.lax.broadcasted_iota(jnp.int32, (tile, 1), 0)
        valid = (i * tile + row) < n                                            # (tile, 1)
        partial = jnp.sum(jnp.where(valid, w * logp, jnp.float32(0.0)))

        # lane-dense (8,128) unmasked store; partial lives only at [0,0] so JAX-side sum is exact
        r8 = jax.lax.broadcasted_iota(jnp.int32, out_ref.shape, 0)
        l128 = jax.lax.broadcasted_iota(jnp.int32, out_ref.shape, 1)
        out_ref[...] = jnp.where((r8 == 0) & (l128 == 0), partial,
                                 jnp.float32(0.0)).astype(jnp.float32)

    block_bytes = tile * bytes_per_row + tile * 4 + 8 * 128 * 4
    vmem_bytes = int(min(max(4 * block_bytes + (2 << 20), 4 << 20), 96 << 20))

    partials = pl.pallas_call(
        kernel,
        out_shape=jax.ShapeDtypeStruct((nb * 8, 128), jnp.float32),
        grid=(nb,),
        in_specs=[
            pl.BlockSpec((tile, c), lambda i: (i, 0)),
            pl.BlockSpec((tile, 1), lambda i: (i, 0)),
        ],
        out_specs=pl.BlockSpec((8, 128), lambda i: (i, 0)),
        compiler_params=pltpu.CompilerParams(
            dimension_semantics=("parallel",),
            vmem_limit_bytes=vmem_bytes,
        ),
    )(x, t)

    # every non-[0,0] element of each block is zero, so a plain sum recovers the per-block partials exactly
    return -jnp.sum(partials) / n


def _ref_loss(logits, targets, beta=BETA):
    """Plain-JAX reference mirroring the PyTorch forward exactly."""
    p = jax.nn.softmax(logits.astype(jnp.float32), axis=1)
    eps = jnp.finfo(logits.dtype).eps
    p = jnp.clip(p, eps, 1.0 - eps)
    c = logits.shape[1]
    y_true = jax.nn.one_hot(targets, c, dtype=jnp.float32)
    y_hard = jax.nn.one_hot(jnp.argmax(p, axis=1), c, dtype=jnp.float32)
    return -jnp.mean(jnp.sum((beta * y_true + (1.0 - beta) * y_hard) * jnp.log(p), axis=1))


if __name__ == "__main__":
    key = jax.random.PRNGKey(0)
    k1, k2, k3, k4, k5, k6 = jax.random.split(key, 6)

    # small classification-head shape
    N, C = 8, 16
    logits = jax.random.normal(k1, (N, C), dtype=jnp.float32)
    targets = jax.random.randint(k2, (N,), 0, C, dtype=jnp.int32)
    loss = boot_hard_loss(logits, targets)
    jax.block_until_ready(loss)
    ref = _ref_loss(logits, targets)
    assert jnp.allclose(loss, ref, rtol=1e-5, atol=1e-6), (loss, ref)

    # multi-block + batch-padding path (N not a multiple of the tile)
    N2, C2 = 37, 24
    logits2 = jax.random.normal(k3, (N2, C2), dtype=jnp.float32)
    targets2 = jax.random.randint(k4, (N2,), 0, C2, dtype=jnp.int32)
    loss2 = boot_hard_loss(logits2, targets2, max_tile_rows=16)
    jax.block_until_ready(loss2)
    ref2 = _ref_loss(logits2, targets2)
    assert jnp.allclose(loss2, ref2, rtol=1e-5, atol=1e-6), (loss2, ref2)

    # bf16-on-the-wire path (upcast happens inside the kernel)
    N3, C3 = 24, 32
    logits3 = jax.random.normal(k5, (N3, C3), dtype=jnp.float32).astype(jnp.bfloat16)
    targets3 = jax.random.randint(k6, (N3,), 0, C3, dtype=jnp.int32)
    loss3 = boot_hard_loss(logits3, targets3)
    jax.block_until_ready(loss3)
    ref3 = _ref_loss(logits3, targets3)
    assert jnp.allclose(loss3, ref3, rtol=1e-2, atol=1e-3), (loss3, ref3)

    print("KERNEL_OK")
</pallas_src>

<mosaic_0001>
module attributes {stable_mosaic.version = 11 : i64} {
  func.func @kernel(%arg0: i32, %arg1: memref<8x16xf32, #tpu.memory_space<vmem>>, %arg2: memref<8x1xi32, #tpu.memory_space<vmem>>, %arg3: memref<8x128xf32, #tpu.memory_space<vmem>>) attributes {dimension_semantics = [#tpu.dimension_semantics<parallel>], iteration_bounds = array<i64: 1>, scalar_prefetch = 0 : i64, scratch_operands = 0 : i64, tpu.core_type = #tpu.core_type<tc>, window_params = [{transform_indices = @transform_0, window_bounds = array<i64: 8, 16>}, {transform_indices = @transform_1, window_bounds = array<i64: 8, 1>}, {transform_indices = @transform_2, window_bounds = array<i64: 8, 128>}]} {
    %c0 = arith.constant 0 : index
    %c0_0 = arith.constant 0 : index
    %0 = vector.load %arg1[%c0, %c0_0] : memref<8x16xf32, #tpu.memory_space<vmem>>, vector<8x16xf32>
    %c0_1 = arith.constant 0 : index
    %c0_2 = arith.constant 0 : index
    %1 = vector.load %arg2[%c0_1, %c0_2] : memref<8x1xi32, #tpu.memory_space<vmem>>, vector<8x1xi32>
    %cst = arith.constant dense<0xFF800000> : vector<8xf32>
    %2 = vector.multi_reduction <maximumf>, %0, %cst [1] : vector<8x16xf32> to vector<8xf32>
    %3 = vector.shape_cast %2 : vector<8xf32> to vector<8x1xf32>
    %4 = vector.broadcast %3 : vector<8x1xf32> to vector<8x16xf32>
    %5 = arith.subf %0, %4 : vector<8x16xf32>
    %6 = math.exp %5 : vector<8x16xf32>
    %cst_3 = arith.constant dense<0.000000e+00> : vector<8xf32>
    %7 = vector.multi_reduction <add>, %6, %cst_3 [1] : vector<8x16xf32> to vector<8xf32>
    %8 = vector.shape_cast %7 : vector<8xf32> to vector<8x1xf32>
    %9 = math.log %8 : vector<8x1xf32>
    %10 = vector.broadcast %9 : vector<8x1xf32> to vector<8x16xf32>
    %11 = arith.subf %5, %10 : vector<8x16xf32>
    %cst_4 = arith.constant -15.9423847 : f32
    %cst_5 = arith.constant -1.19209304E-7 : f32
    %12 = vector.broadcast %cst_4 : f32 to vector<8x16xf32>
    %13 = arith.maximumf %12, %11 : vector<8x16xf32>
    %14 = vector.broadcast %cst_5 : f32 to vector<8x16xf32>
    %15 = arith.minimumf %14, %13 : vector<8x16xf32>
    %16 = tpu.iota {dimensions = array<i32: 1>} : vector<8x16xi32>
    %17 = vector.broadcast %3 : vector<8x1xf32> to vector<8x16xf32>
    %18 = arith.cmpf oeq, %0, %17 : vector<8x16xf32>
    %c16_i32 = arith.constant 16 : i32
    %19 = vector.broadcast %c16_i32 : i32 to vector<8x16xi32>
    %20 = arith.select %18, %16, %19 : vector<8x16xi1>, vector<8x16xi32>
    %cst_6 = arith.constant dense<2147483647> : vector<8xi32>
    %21 = vector.multi_reduction <minsi>, %20, %cst_6 [1] : vector<8x16xi32> to vector<8xi32>
    %22 = vector.shape_cast %21 : vector<8xi32> to vector<8x1xi32>
    %23 = vector.broadcast %1 : vector<8x1xi32> to vector<8x16xi32>
    %24 = arith.cmpi eq, %16, %23 : vector<8x16xi32>
    %cst_7 = arith.constant 8.000000e-01 : f32
    %cst_8 = arith.constant 0.000000e+00 : f32
    %25 = vector.broadcast %cst_7 : f32 to vector<8x16xf32>
    %26 = vector.broadcast %cst_8 : f32 to vector<8x16xf32>
    %27 = arith.select %24, %25, %26 : vector<8x16xi1>, vector<8x16xf32>
    %28 = vector.broadcast %22 : vector<8x1xi32> to vector<8x16xi32>
    %29 = arith.cmpi eq, %16, %28 : vector<8x16xi32>
    %cst_9 = arith.constant 2.000000e-01 : f32
    %cst_10 = arith.constant 0.000000e+00 : f32
    %30 = vector.broadcast %cst_9 : f32 to vector<8x16xf32>
    %31 = vector.broadcast %cst_10 : f32 to vector<8x16xf32>
    %32 = arith.select %29, %30, %31 : vector<8x16xi1>, vector<8x16xf32>
    %33 = arith.addf %27, %32 : vector<8x16xf32>
    %34 = tpu.iota {dimensions = array<i32: 0>} : vector<8x1xi32>
    %c8_i32 = arith.constant 8 : i32
    %35 = arith.muli %arg0, %c8_i32 : i32
    %36 = vector.broadcast %35 : i32 to vector<8x1xi32>
    %37 = arith.addi %36, %34 : vector<8x1xi32>
    %c8_i32_11 = arith.constant 8 : i32
    %38 = vector.broadcast %c8_i32_11 : i32 to vector<8x1xi32>
    %39 = arith.cmpi slt, %37, %38 : vector<8x1xi32>
    %40 = arith.mulf %33, %15 : vector<8x16xf32>
    %cst_12 = arith.constant 0.000000e+00 : f32
    %41 = vector.shape_cast %39 : vector<8x1xi1> to vector<8x1xi1>
    %42 = vector.broadcast %41 : vector<8x1xi1> to vector<8x16xi1>
    %43 = vector.broadcast %cst_12 : f32 to vector<8x16xf32>
    %44 = arith.select %42, %40, %43 : vector<8x16xi1>, vector<8x16xf32>
    %45 = vector.shape_cast %44 : vector<8x16xf32> to vector<1x8x16xf32>
    %cst_13 = arith.constant dense<0.000000e+00> : vector<1xf32>
    %46 = vector.multi_reduction <add>, %45, %cst_13 [1, 2] : vector<1x8x16xf32> to vector<1xf32>
    %47 = vector.shape_cast %46 : vector<1xf32> to vector<1x1x1xf32>
    %48 = vector.extract %47[0, 0, 0] : f32 from vector<1x1x1xf32>
    %49 = tpu.iota {dimensions = array<i32: 0>} : vector<8x128xi32>
    %50 = tpu.iota {dimensions = array<i32: 1>} : vector<8x128xi32>
    %c0_i32 = arith.constant 0 : i32
    %51 = vector.broadcast %c0_i32 : i32 to vector<8x128xi32>
    %52 = arith.cmpi eq, %49, %51 : vector<8x128xi32>
    %c0_i32_14 = arith.constant 0 : i32
    %53 = vector.broadcast %c0_i32_14 : i32 to vector<8x128xi32>
    %54 = arith.cmpi eq, %50, %53 : vector<8x128xi32>
    %55 = arith.andi %52, %54 : vector<8x128xi1>
    %cst_15 = arith.constant 0.000000e+00 : f32
    %56 = vector.broadcast %48 : f32 to vector<8x128xf32>
    %57 = vector.broadcast %cst_15 : f32 to vector<8x128xf32>
    %58 = arith.select %55, %56, %57 : vector<8x128xi1>, vector<8x128xf32>
    %c0_16 = arith.constant 0 : index
    %c0_17 = arith.constant 0 : index
    %59 = vector.load %arg3[%c0_16, %c0_17] : memref<8x128xf32, #tpu.memory_space<vmem>>, vector<8x128xf32>
    tpu.vector_store %arg3[%c0_16, %c0_17], %58 {strides = array<i32>} : memref<8x128xf32, #tpu.memory_space<vmem>>, vector<8x128xf32>,
    return
  }
  func.func @transform_0(%arg0: i32) -> (i32, i32) {
    %c0_i32 = arith.constant 0 : i32
    %c0_i32_0 = arith.constant 0 : i32
    return %arg0, %c0_i32 : i32, i32
  }
  func.func @transform_1(%arg0: i32) -> (i32, i32) {
    %c0_i32 = arith.constant 0 : i32
    %c0_i32_0 = arith.constant 0 : i32
    return %arg0, %c0_i32 : i32, i32
  }
  func.func @transform_2(%arg0: i32) -> (i32, i32) {
    %c0_i32 = arith.constant 0 : i32
    %c0_i32_0 = arith.constant 0 : i32
    return %arg0, %c0_i32 : i32, i32
  }
}

</mosaic_0001>

<llo_original>
// kernel: tpu_custom_call.1
$region0: #{tpu_custom_call.1}
  #allocation0 [shape = 'u32[]', space=smem, size = 0x4, offset = 0x4, fixed_abs, tag = 'smem constant byte address 0x4 - core index']
  #allocation1 [shape = 'u32[144,128]{1,0:T(1,128)}', space=vmem, size = 0x12000, scoped, tag = 'internal scratch']
  %s0 = inlined_call_operand.vmem [shape: f32[8,16], index: 0, kind: input, shape index: {}]
  %s1 = inlined_call_operand.vmem [shape: s32[8,1], index: 1, kind: input, shape index: {}]
  %s2 = inlined_call_operand.hbm [shape: f32[8,128], index: 2, kind: output, shape index: {}]
  %s3 = sld [smem:[#allocation0]]
  $region18: #{tpu_custom_call.1} parent=0
    _
  %s5 = ssub.s32 1, %s3
  %s6 = scalar_select 0, %s5, %s3
  $region1: #{tpu_custom_call.1} parent=0
    #allocation2 [shape = 'u8[4096]{0}', space=vmem, size = 0x1000, scoped, tag = 'output window, operand 0, single buffered']
    #allocation3 [shape = 's32[1]{0}', space=sflag, size = 0x4, scoped, tag = 'scoped memory for tpu_custom_call.1']
    %7 = vsyncpa [#allocation3], 0
    // Predicated region
    $region2: #{tpu_custom_call.1} parent=1 // pred_check
      _
    $region3: #{tpu_custom_call.1} parent=1 // pred_check_branch
      %9 = sbr.rel (0) target = $region5
    $region4: #{tpu_custom_call.1} parent=1 // pred_region
      _
    $region5: #{tpu_custom_call.1} parent=1 // pred_fallthru
      _
    // Predicated region
    $region6: #{tpu_custom_call.1} parent=1 // pred_check
      _
    $region7: #{tpu_custom_call.1} parent=1 // pred_check_branch
      %11 = sbr.rel (0) target = $region9
    $region8: #{tpu_custom_call.1} parent=1 // pred_region
      _
    $region9: #{tpu_custom_call.1} parent=1 // pred_fallthru
      _
    %v12 = vld [vmem:[%s0] sm:$0xff]
    %v13 = vld [vmem:[%s1] sm:$0xff]
    %vm14 = vcmask 130048
    %v15 = vsel %vm14, %v12, -inf
    %16 = vmax.xlane.f32.xlu0 %v15
    %v17 = vpop.xlane.xlu0 %16
    %v18 = vsub.f32 %v12, %v17
    %v19 = vmul.f32 %v18, 1.442695
    %v20 = vpow.pop %v19
    %v21 = vsel %vm14, %v20, 0.0
    %22 = vadd.xlane.f32.xlu0 %v21
    %v23 = vpop.xlane.xlu0 %22
    %v24 = vlog2.pop %v23
    %v25 = vmul.f32 %v24, 0.6931472
    %v26 = vsub.f32 %v18, %v25
    %v27 = vmax.f32 %v26, -15.942385
    %v28 = vmin.f32 %v27, -1.192093e-07
    %v29 = vlaneseq
    %v30 = vand.u32 %v29, 127
    %vm31 = vcmp.eq.f32.partialorder %v12, %v17
    %v32 = vsel %vm31, %v30, 16
    %v33 = vsel %vm14, %v32, 2147483647
    %v34 = vand.u32 %v33, 65535
    %v35 = vshra.s32 %v33, 16
    %v36 = vcvt.s32.f32 %v34
    %v37 = vcvt.s32.f32 %v35
    %38 = vmin.xlane.f32.xlu0 %v37
    %v39 = vpop.xlane.xlu0 %38
    %vm40 = vcmp.eq.f32.partialorder %v37, %v39
    %v41 = vsel %vm40, %v36, inf
    %42 = vmin.xlane.f32.xlu0 %v41
    %v43 = vpop.xlane.xlu0 %42
    %v44 = vcvt.f32.s32 %v43
    %v45 = vcvt.f32.s32 %v39
    %v46 = vshll.u32 %v45, 16
    %v47 = vadd.s32 %v46, %v44
    %48 = vset.pattern.permute.xlu0 0
    %49 = vperm.xlu0 %48, %v13
    %v50 = vpop.permute.xlu0 %49
    %vm51 = vcmp.eq.s32.totalorder %v30, %v50
    %v52 = vsel %vm51, 0.8, 0.0
    %vm53 = vcmp.eq.s32.totalorder %v30, %v47
    %v54 = vsel %vm53, 0.2, 0.0
    %v55 = vadd.f32 %v52, %v54
    %v56 = vlaneseq
    %v57 = vshrl.u32 %v56, 7
    %s58 = smul.u32 0, 8
    %v59 = vstv %s58
    %v60 = vadd.s32 %v59, %v57
    %vm61 = vcmp.lt.s32.totalorder %v60, 8
    %v62 = vmul.f32 %v55, %v28
    %v63 = vsel %vm61, 1, 0
    %vm64 = vcmp.eq.s32.totalorder %v63, 1
    %v65 = vsel %vm64, %v62, 0.0
    %v66 = vsel %vm14, %v65, 0.0
    %67 = vadd.xlane.f32.xlu0 %v66
    %v68 = vpop.xlane.xlu0 %67
    %v69 = vrot.slane %v68, 4
    %v70 = vadd.f32 %v68, %v69
    %v71 = vrot.slane %v70, 2
    %v72 = vadd.f32 %v70, %v71
    %v73 = vrot.slane %v72, 1
    %v74 = vadd.f32 %v72, %v73
    %s75 = vtos %v74
    %vm76 = vcmp.eq.s32.totalorder %v57, 0
    %vm77 = vcmp.eq.s32.totalorder %v30, 0
    %vm78 = vmand %vm76, %vm77
    %v79 = vstv %s75
    %v80 = vsel %vm78, %v79, 0.0
    %81 = vst [vmem:[#allocation2] sm:$0xff] %v80
    // Predicated region
    $region10: #{tpu_custom_call.1} parent=1 // pred_check
      _
    $region11: #{tpu_custom_call.1} parent=1 // pred_check_branch
      %83 = sbr.rel (0) target = $region13
    $region12: #{tpu_custom_call.1} parent=1 // pred_region
      %s85 = ssub.s32 128, 128
      %86 = vsyncadd [#allocation3], %s85
      %s88 = sshll.u32 [#allocation2], 4
      %s89 = int_to_ptr.vmem [resolvable:$true] %s88
      %91 = dma.vmem_to_hbm [thread:$0]  %s89, 128, %s2, [#allocation3]
    $region13: #{tpu_custom_call.1} parent=1 // pred_fallthru
      _
    // Predicated region
    $region14: #{tpu_custom_call.1} parent=1 // pred_check
      _
    $region15: #{tpu_custom_call.1} parent=1 // pred_check_branch
      %93 = sbr.rel (0) target = $region17
    $region16: #{tpu_custom_call.1} parent=1 // pred_region
      %94 = dma.done [#allocation3], 128
    $region17: #{tpu_custom_call.1} parent=1 // pred_fallthru
      _
    %95 = vsyncpa [#allocation3], 1

</llo_original>
